<compile_context>
chip_gen: v7x
topology: tpu7x:2x2x1
jax: 0.10.0
libtpu: 0.0.40
codegen_flags: <defaults>
</compile_context>

<pallas_src>
import functools

import jax
import jax.numpy as jnp
from jax.experimental import pallas as pl
from jax.experimental.pallas import tpu as pltpu


# ---------------------------------------------------------------------------
# Pallas kernels
# ---------------------------------------------------------------------------
def project_kernel(h_ref, w_ref, feat_ref):
    """Head-fused projection: feat = h @ W_all, one src tile per grid step."""
    feat_ref[...] = jnp.dot(
        h_ref[...].astype(jnp.bfloat16), w_ref[...],
        preferred_element_type=jnp.float32).astype(jnp.bfloat16)


def gat_attention_kernel(feat_ref, elt_ref, er_ref, adj_ref, b_ref, out_ref,
                         m_sc, l_sc, acc_sc, *,
                         num_heads, head_dim, apply_relu, fuse_mean_logsoftmax):
    """Online masked edge-softmax + aggregation.

    Grid = (dst_tiles [parallel], src_tiles [arbitrary reduction]).
      feat_ref : (TS, H*F) bf16   projected source features (head-fused lanes)
      elt_ref  : (H, TS)   f32    source attention logits, lane-major
      er_ref   : (TD, H)   f32    dst attention logits
      adj_ref  : (TD, TS)  bf16   0/1 adjacency mask (dst, src)
      b_ref    : (1, H*F)  f32    bias
      out_ref  : (TD, H*F) or (TD, F) f32
    """
    H, F = num_heads, head_dim
    s_idx = pl.program_id(1)

    @pl.when(s_idx == 0)
    def _init():
        m_sc[...] = jnp.full(m_sc.shape, -1e30, dtype=jnp.float32)
        l_sc[...] = jnp.zeros(l_sc.shape, dtype=jnp.float32)
        acc_sc[...] = jnp.zeros(acc_sc.shape, dtype=jnp.float32)

    feat = feat_ref[...]                          # (TS, H*F) bf16
    adj = adj_ref[...]                            # (TD, TS) bf16 {0,1}
    mask = adj > 0
    mask_f = adj.astype(jnp.float32)

    for h in range(H):                            # small static head loop
        sl = slice(h * F, (h + 1) * F)
        # e[dst, src] = leaky_relu(er[dst] + el[src], 0.2)
        e = er_ref[:, h:h + 1] + elt_ref[h:h + 1, :]          # (TD, TS)
        e = jnp.where(e > 0, e, 0.2 * e)
        e = jnp.where(mask, e, -1e30)                         # mask non-edges

        m_prev = m_sc[:, h:h + 1]
        m_new = jnp.maximum(m_prev, jnp.max(e, axis=-1, keepdims=True))
        corr = jnp.exp(m_prev - m_new)
        p = jnp.exp(e - m_new) * mask_f                       # keep the mask!

        l_sc[:, h:h + 1] = corr * l_sc[:, h:h + 1] + jnp.sum(
            p, axis=-1, keepdims=True)
        acc_sc[:, sl] = corr * acc_sc[:, sl] + jnp.dot(
            p.astype(jnp.bfloat16), feat[:, sl],
            preferred_element_type=jnp.float32)
        m_sc[:, h:h + 1] = m_new

    @pl.when(s_idx == pl.num_programs(1) - 1)
    def _finalize():
        # 1/denom on the EUP; folded into the F-wide epilogue, not (TD, TS).
        inv_l = pl.reciprocal(jnp.maximum(l_sc[...], 1e-12), approx=True)
        b = b_ref[...]
        if fuse_mean_logsoftmax:
            acc = jnp.zeros((out_ref.shape[0], F), jnp.float32)
            for h in range(H):
                sl = slice(h * F, (h + 1) * F)
                acc = acc + acc_sc[:, sl] * inv_l[:, h:h + 1] + b[:, sl]
            mean = acc * (1.0 / H)                            # mean over heads
            mx = jnp.max(mean, axis=-1, keepdims=True)
            z = mean - mx
            lse = jnp.log(jnp.sum(jnp.exp(z), axis=-1, keepdims=True))
            out_ref[...] = z - lse                            # log_softmax
        else:
            for h in range(H):
                sl = slice(h * F, (h + 1) * F)
                r = acc_sc[:, sl] * inv_l[:, h:h + 1] + b[:, sl]
                if apply_relu:
                    r = jnp.maximum(r, 0.0)
                out_ref[:, sl] = r


# ---------------------------------------------------------------------------
# Wrappers
# ---------------------------------------------------------------------------
def _round_up(x, m):
    return ((x + m - 1) // m) * m


def gat_layer(h_src, h_dst, adj, W_src, W_dst, attn_l, attn_r, bias, *,
              apply_relu, fuse_mean_logsoftmax, dst_tile=128, src_tile=256):
    H, D, F = W_src.shape
    N_src = h_src.shape[0]
    N_dst = h_dst.shape[0]

    # Head-fused weights: lane dim = H*F.  W_all[d, h*F + f] = W_src[h, d, f].
    W_all = jnp.transpose(W_src, (1, 0, 2)).reshape(D, H * F).astype(jnp.bfloat16)
    # Attention vectors folded through the projection:
    #   el = (h @ W_src[h]) . attn_l[h] == h @ (W_src[h] @ attn_l[h])
    AL = jnp.einsum("hdf,hf->dh", W_src, attn_l[:, 0, :])     # (D, H)
    AR = jnp.einsum("hdf,hf->dh", W_dst, attn_r[:, 0, :])     # (D, H)
    b_all = bias.reshape(1, H * F).astype(jnp.float32)

    TD, TS = dst_tile, src_tile
    N_dst_p = _round_up(N_dst, TD)
    N_src_p = _round_up(N_src, TS)

    hs = jnp.pad(h_src.astype(jnp.float32), ((0, N_src_p - N_src), (0, 0)))
    hd = jnp.pad(h_dst.astype(jnp.float32), ((0, N_dst_p - N_dst), (0, 0)))
    adj_p = jnp.pad(adj, ((0, N_dst_p - N_dst),
                          (0, N_src_p - N_src))).astype(jnp.bfloat16)

    n_src_tiles = N_src_p // TS
    n_dst_tiles = N_dst_p // TD

    # ---- projection (Pallas): ONE head-fused matmul per source set ----
    feat = pl.pallas_call(
        project_kernel,
        out_shape=jax.ShapeDtypeStruct((N_src_p, H * F), jnp.bfloat16),
        grid=(n_src_tiles,),
        in_specs=[
            pl.BlockSpec((TS, D), lambda s: (s, 0)),
            pl.BlockSpec((D, H * F), lambda s: (0, 0)),
        ],
        out_specs=pl.BlockSpec((TS, H * F), lambda s: (s, 0)),
        compiler_params=pltpu.CompilerParams(
            dimension_semantics=("parallel",)),
    )(hs, W_all)

    # Attention logits: tiny (N, D) x (D, H) contractions, done once in XLA.
    # el is pre-transposed to lane-major (H, N_src) so the attention kernel
    # never pays an in-kernel XLU transpose per tile.
    el_t = jnp.dot(hs, AL).T                                   # (H, N_src_p)
    er = jnp.dot(hd, AR)                                       # (N_dst_p, H)

    out_cols = F if fuse_mean_logsoftmax else H * F
    kernel = functools.partial(
        gat_attention_kernel, num_heads=H, head_dim=F,
        apply_relu=apply_relu, fuse_mean_logsoftmax=fuse_mean_logsoftmax)

    out = pl.pallas_call(
        kernel,
        out_shape=jax.ShapeDtypeStruct((N_dst_p, out_cols), jnp.float32),
        grid=(n_dst_tiles, n_src_tiles),
        in_specs=[
            pl.BlockSpec((TS, H * F), lambda d, s: (s, 0)),    # feat (bf16)
            pl.BlockSpec((H, TS), lambda d, s: (0, s)),        # el^T
            pl.BlockSpec((TD, H), lambda d, s: (d, 0)),        # er
            pl.BlockSpec((TD, TS), lambda d, s: (d, s)),       # adj (bf16)
            pl.BlockSpec((1, H * F), lambda d, s: (0, 0)),     # bias
        ],
        out_specs=pl.BlockSpec((TD, out_cols), lambda d, s: (d, 0)),
        scratch_shapes=[
            pltpu.VMEM((TD, H), jnp.float32),       # running max m
            pltpu.VMEM((TD, H), jnp.float32),       # running denom l
            pltpu.VMEM((TD, H * F), jnp.float32),   # weighted-sum accumulator
        ],
        compiler_params=pltpu.CompilerParams(
            dimension_semantics=("parallel", "arbitrary")),
    )(feat, el_t, er, adj_p, b_all)
    return out[:N_dst]


def gat_forward(x, adjs, params, n_layers):
    """Full model forward over sampled blocks (dense adjacency masks)."""
    h = x
    for l, (adj, p) in enumerate(zip(adjs, params)):
        n_dst = adj.shape[0]
        h_dst = h[:n_dst]                     # dst nodes are a prefix of src
        last = (l == n_layers - 1)
        h = gat_layer(h, h_dst, adj, p["W_src"], p["W_dst"],
                      p["attn_l"], p["attn_r"], p["bias"],
                      apply_relu=not last,
                      fuse_mean_logsoftmax=last)
        # intermediate layers: h is already the lane-dense (N_dst, H*F)
        # head-flattened output; last layer: (N_dst, n_classes) log-probs.
    return h


# ---------------------------------------------------------------------------
# Deterministic parameter / input construction
# ---------------------------------------------------------------------------
def make_layer_params(key, num_heads, d_in, d_out):
    ks = jax.random.split(key, 5)
    scale = 0.1
    return {
        "W_src":  scale * jax.random.normal(ks[0], (num_heads, d_in, d_out), jnp.float32),
        "W_dst":  scale * jax.random.normal(ks[1], (num_heads, d_in, d_out), jnp.float32),
        "attn_l": scale * jax.random.normal(ks[2], (num_heads, 1, d_out), jnp.float32),
        "attn_r": scale * jax.random.normal(ks[3], (num_heads, 1, d_out), jnp.float32),
        "bias":   scale * jax.random.normal(ks[4], (num_heads, 1, d_out), jnp.float32),
    }


def make_block_adj(key, n_dst, n_src):
    adj = jax.random.bernoulli(key, 0.3, (n_dst, n_src)).astype(jnp.float32)
    # every dst node gets at least one in-edge (self-edge: dst is a src prefix)
    idx = jnp.arange(n_dst)
    adj = adj.at[idx, idx].set(1.0)
    return adj


if __name__ == "__main__":
    in_feats, n_hidden, n_classes = 32, 32, 8
    n_layers, num_heads = 3, 4                 # hidden width H*F = 128 lanes
    # node counts per hop: src of layer l = node_counts[l], dst = node_counts[l+1]
    node_counts = [512, 384, 256, 128]

    key = jax.random.PRNGKey(0)
    k_feat, k_adj, k_par = jax.random.split(key, 3)

    x = jax.random.normal(k_feat, (node_counts[0], in_feats), jnp.float32)

    adj_keys = jax.random.split(k_adj, n_layers)
    adjs = [make_block_adj(adj_keys[l], node_counts[l + 1], node_counts[l])
            for l in range(n_layers)]

    d_ins = [in_feats] + [n_hidden * num_heads] * (n_layers - 1)
    d_outs = [n_hidden] * (n_layers - 1) + [n_classes]
    par_keys = jax.random.split(k_par, n_layers)
    params = [make_layer_params(par_keys[l], num_heads, d_ins[l], d_outs[l])
              for l in range(n_layers)]

    out = gat_forward(x, adjs, params, n_layers)
    out = jax.block_until_ready(out)
    assert out.shape == (node_counts[-1], n_classes), out.shape
    assert bool(jnp.all(jnp.isfinite(out)))
    print("KERNEL_OK")
</pallas_src>

<mosaic_0001>
module attributes {stable_mosaic.version = 11 : i64} {
  func.func @project_kernel(%arg0: i32, %arg1: memref<256x32xf32, #tpu.memory_space<vmem>>, %arg2: memref<32x128xbf16, #tpu.memory_space<vmem>>, %arg3: memref<256x128xbf16, #tpu.memory_space<vmem>>) attributes {dimension_semantics = [#tpu.dimension_semantics<parallel>], iteration_bounds = array<i64: 2>, scalar_prefetch = 0 : i64, scratch_operands = 0 : i64, tpu.core_type = #tpu.core_type<tc>, window_params = [{transform_indices = @transform_0, window_bounds = array<i64: 256, 32>}, {pipeline_mode = #tpu.pipeline_mode<synchronous>, transform_indices = @transform_1, window_bounds = array<i64: 32, 128>}, {transform_indices = @transform_2, window_bounds = array<i64: 256, 128>}]} {
    %c0 = arith.constant 0 : index
    %c0_0 = arith.constant 0 : index
    %0 = vector.load %arg1[%c0, %c0_0] : memref<256x32xf32, #tpu.memory_space<vmem>>, vector<256x32xf32>
    %1 = arith.truncf %0 : vector<256x32xf32> to vector<256x32xbf16>
    %c0_1 = arith.constant 0 : index
    %c0_2 = arith.constant 0 : index
    %2 = vector.load %arg2[%c0_1, %c0_2] : memref<32x128xbf16, #tpu.memory_space<vmem>>, vector<32x128xbf16>
    %cst = arith.constant dense<0.000000e+00> : vector<256x128xf32>
    %3 = tpu.matmul %1, %2, %cst {dimension_numbers = #tpu.dot_dimension_numbers<[1], [0], [0], [1], [0, 0, 1, 1], [], []>} : vector<256x32xbf16>, vector<32x128xbf16>, vector<256x128xf32> -> vector<256x128xf32>
    %4 = arith.truncf %3 : vector<256x128xf32> to vector<256x128xbf16>
    %c0_3 = arith.constant 0 : index
    %c0_4 = arith.constant 0 : index
    %5 = vector.load %arg3[%c0_3, %c0_4] : memref<256x128xbf16, #tpu.memory_space<vmem>>, vector<256x128xbf16>
    tpu.vector_store %arg3[%c0_3, %c0_4], %4 {strides = array<i32>} : memref<256x128xbf16, #tpu.memory_space<vmem>>, vector<256x128xbf16>,
    return
  }
  func.func @transform_0(%arg0: i32) -> (i32, i32) {
    %c0_i32 = arith.constant 0 : i32
    %c0_i32_0 = arith.constant 0 : i32
    return %arg0, %c0_i32 : i32, i32
  }
  func.func @transform_1(%arg0: i32) -> (i32, i32) {
    %c0_i32 = arith.constant 0 : i32
    %c0_i32_0 = arith.constant 0 : i32
    %c0_i32_1 = arith.constant 0 : i32
    return %c0_i32, %c0_i32_0 : i32, i32
  }
  func.func @transform_2(%arg0: i32) -> (i32, i32) {
    %c0_i32 = arith.constant 0 : i32
    %c0_i32_0 = arith.constant 0 : i32
    return %arg0, %c0_i32 : i32, i32
  }
}

</mosaic_0001>

<llo_original>
// kernel: tpu_custom_call.1
$region0: #{tpu_custom_call.1}
  #allocation0 [shape = 'u32[]', space=smem, size = 0x4, offset = 0x4, fixed_abs, tag = 'smem constant byte address 0x4 - core index']
  #allocation1 [shape = 'u32[144,128]{1,0:T(1,128)}', space=vmem, size = 0x12000, scoped, tag = 'internal scratch']
  %s0 = inlined_call_operand.vmem [shape: f32[512,32], index: 0, kind: input, shape index: {}]
  %s1 = inlined_call_operand.vmem [shape: bf16[32,128], index: 1, kind: input, shape index: {}]
  %s2 = inlined_call_operand.hbm [shape: bf16[512,128], index: 2, kind: output, shape index: {}]
  %s3 = sld [smem:[#allocation0]]
  $region41: #{tpu_custom_call.1} parent=0
    _
  %s5 = ssub.s32 1, %s3
  %s6 = scalar_select 0, %s5, %s3
  $region1: #{tpu_custom_call.1} parent=0
    #allocation2 [shape = 'u8[131072]{0}', space=vmem, size = 0x20000, scoped, tag = 'output window, operand 0']
    #allocation3 [shape = 's32[2]{0}', space=sflag, size = 0x8, scoped, tag = 'scoped memory for tpu_custom_call.1']
    %7 = vsyncpa [#allocation3], 0
    %s8 = scalar_lea.sflag [#allocation3], 1
    %9 = vsyncpa %s8, 0
    loop: start=0, step=1, limit=4
    $region2: #{tpu_custom_call.1} parent=1 // loop_pre_header
      _
    $region3: #{tpu_custom_call.1} parent=1 // loop_header
      %s11 = sphi 0, %s15
      %p12 = scmp.ge.s32.totalorder %s11, 4
      %s21 = sphi 0, %s23
      %s24 = sphi 0, %s21
      %s25 = sphi 0, %s24
      %s41 = sphi 0, %s25
      %s45 = sphi 0, %s45
      %s47 = sphi 0, %s45
      %s48 = sphi 0, %s47
      %s62 = sphi 0, %s48
      %s68 = sphi 0, %s70
      %s71 = sphi 0, %s68
      %s72 = sphi 0, %s71
      %s88 = sphi 0, %s72
    $region4: #{tpu_custom_call.1} parent=1 // loop_header_branch
      %14 = sbr.rel (%p12) target = $region8
    $region5: #{tpu_custom_call.1} parent=1 // loop_body
      %s16 = ssub.s32 %s11, 1
      %s17 = ssub.s32 %s11, 2
      %s18 = sadd.s32 %s11, 1
      %s19 = ssub.s32 %s11, %s18
      %p20 = scmp.eq.s32.totalorder %s19, 0
      %s22 = sadd.s32 %s21, 1
      %s23 = scalar_select %p20, %s21, %s22
      %p26 = pneg %p20
      %p27 = scmp.eq.s32.totalorder %s11, 1
      %p28 = por %p26, %p27
      %p29 = scmp.ne.s32.totalorder %s21, %s24
      %p30 = scmp.eq.s32.totalorder %s11, 0
      %p31 = por %p29, %p30
      %p32 = scmp.ne.s32.totalorder %s21, %s24
      %p33 = scmp.eq.s32.totalorder %s16, 1
      %p34 = por %p32, %p33
      %p35 = scmp.ne.s32.totalorder %s24, %s25
      %p36 = scmp.eq.s32.totalorder %s16, 0
      %p37 = por %p35, %p36
      %p38 = scmp.ne.s32.totalorder %s24, %s25
      %p39 = scmp.eq.s32.totalorder %s17, 1
      %p40 = por %p38, %p39
      %p42 = scmp.ne.s32.totalorder %s25, %s41
      %p43 = scmp.eq.s32.totalorder %s17, 0
      %p44 = por %p42, %p43
      %s46 = sadd.s32 %s45, 1
      %p49 = scmp.eq.s32.totalorder %s11, 1
      %p50 = scmp.ne.s32.totalorder %s45, %s47
      %p51 = scmp.eq.s32.totalorder %s11, 0
      %p52 = por %p50, %p51
      %p53 = scmp.ne.s32.totalorder %s45, %s47
      %p54 = scmp.eq.s32.totalorder %s16, 1
      %p55 = por %p53, %p54
      %p56 = scmp.ne.s32.totalorder %s47, %s48
      %p57 = scmp.eq.s32.totalorder %s16, 0
      %p58 = por %p56, %p57
      %p59 = scmp.ne.s32.totalorder %s47, %s48
      %p60 = scmp.eq.s32.totalorder %s17, 1
      %p61 = por %p59, %p60
      %p63 = scmp.ne.s32.totalorder %s48, %s62
      %p64 = scmp.eq.s32.totalorder %s17, 0
      %p65 = por %p63, %p64
      %s66 = ssub.s32 %s11, %s18
      %p67 = scmp.eq.s32.totalorder %s66, 0
      %s69 = sadd.s32 %s68, 1
      %s70 = scalar_select %p67, %s68, %s69
      %p73 = pneg %p67
      %p74 = scmp.eq.s32.totalorder %s11, 1
      %p75 = por %p73, %p74
      %p76 = scmp.ne.s32.totalorder %s68, %s71
      %p77 = scmp.eq.s32.totalorder %s11, 0
      %p78 = por %p76, %p77
      %p79 = scmp.ne.s32.totalorder %s68, %s71
      %p80 = scmp.eq.s32.totalorder %s16, 1
      %p81 = por %p79, %p80
      %p82 = scmp.ne.s32.totalorder %s71, %s72
      %p83 = scmp.eq.s32.totalorder %s16, 0
      %p84 = por %p82, %p83
      %p85 = scmp.ne.s32.totalorder %s71, %s72
      %p86 = scmp.eq.s32.totalorder %s17, 1
      %p87 = por %p85, %p86
      %p89 = scmp.ne.s32.totalorder %s72, %s88
      %p90 = scmp.eq.s32.totalorder %s17, 0
      %p91 = por %p89, %p90
      %p92 = scmp.le.s32.totalorder 1, %s11
      %p93 = scmp.lt.s32.totalorder %s11, 3
      %p94 = pnand %p92, %p93
      %p95 = pneg %p94
      // Predicated region
      $region9: #{tpu_custom_call.1} parent=5 // pred_check
        _
      $region10: #{tpu_custom_call.1} parent=5 // pred_check_branch
        %97 = sbr.rel (%p94) target = $region12
      $region11: #{tpu_custom_call.1} parent=5 // pred_region
        %s98 = ssub.s32 %s11, 1
        // Predicated region
        $region13: #{tpu_custom_call.1} parent=11 // pred_check
          %p99 = pneg %p58
        $region14: #{tpu_custom_call.1} parent=11 // pred_check_branch
          %101 = sbr.rel (%p99) target = $region16
        $region15: #{tpu_custom_call.1} parent=11 // pred_region
          _
        $region16: #{tpu_custom_call.1} parent=11 // pred_fallthru
          _
      $region12: #{tpu_custom_call.1} parent=5 // pred_fallthru
        _
      %p102 = scmp.lt.s32.totalorder %s11, 2
      // Predicated region
      $region17: #{tpu_custom_call.1} parent=5 // pred_check
        %p103 = pneg %p102
      $region18: #{tpu_custom_call.1} parent=5 // pred_check_branch
        %105 = sbr.rel (%p103) target = $region20
      $region19: #{tpu_custom_call.1} parent=5 // pred_region
        // Predicated region
        $region21: #{tpu_custom_call.1} parent=19 // pred_check
          %p106 = pneg %p31
        $region22: #{tpu_custom_call.1} parent=19 // pred_check_branch
          %108 = sbr.rel (%p106) target = $region24
        $region23: #{tpu_custom_call.1} parent=19 // pred_region
          %s109 = smul.u32 32, %s11
          %p110 = scmp.lt.s32.totalorder %s109, 63
          %s111 = scalar_select %p110, %s109, 63
          %s112 = smul.addr %s111, 8
          %s113 = scalar_lea.vmem %s0, %s112
          %s114 = smul.u32 32, %s11
        $region24: #{tpu_custom_call.1} parent=19 // pred_fallthru
          _
      $region20: #{tpu_custom_call.1} parent=5 // pred_fallthru
        _
      %p115 = scmp.le.s32.totalorder 1, %s11
      %p116 = scmp.lt.s32.totalorder %s11, 3
      %p117 = pnand %p115, %p116
      %p118 = pneg %p117
      // Predicated region
      $region25: #{tpu_custom_call.1} parent=5 // pred_check
        _
      $region26: #{tpu_custom_call.1} parent=5 // pred_check_branch
        %120 = sbr.rel (%p117) target = $region28
      $region27: #{tpu_custom_call.1} parent=5 // pred_region
        %s121 = ssub.s32 %s11, 1
        %s122 = smul.u32 32, %s16
        %p123 = scmp.lt.s32.totalorder %s122, 63
        %s124 = scalar_select %p123, %s122, 63
        %s125 = smul.addr %s124, 8
        %s126 = scalar_lea.vmem %s0, %s125
        %p127 = pneg %p37
        %p128 = pneg %p34
        %p129 = pneg %p58
        %p130 = pneg %p55
        %p131 = pneg %p84
        %p132 = pneg %p81
        %s133 = sand.u32 %s71, 1
        %s134 = scalar_lea.sflag [#allocation3], %s133
        %s135 = sand.u32 %s71, 1
        %s136 = smul.addr %s135, 128
        %s137 = scalar_lea.vmem [#allocation2], %s136
        %s138 = smul.u32 32, %s16
        %p139 = scmp.lt.s32.totalorder %s138, 63
        %s140 = scalar_select %p139, %s138, 63
        %s141 = smul.addr %s140, 8
        %s142 = scalar_lea.vmem %s0, %s141
        %s143 = smul.u32 32, %s16
        %s144 = smul.u32 32, %s16
        %v146 = vld [vmem:[%s142] sm:$0xff]
        %v147 = vld [vmem:[%s142 + $0x8] sm:$0xff]
        %v148 = vld [vmem:[%s142 + $0x10] sm:$0xff]
        %v149 = vld [vmem:[%s142 + $0x18] sm:$0xff]
        %v150 = vld [vmem:[%s142 + $0x20] sm:$0xff]
        %v151 = vld [vmem:[%s142 + $0x28] sm:$0xff]
        %v152 = vld [vmem:[%s142 + $0x30] sm:$0xff]
        %v153 = vld [vmem:[%s142 + $0x38] sm:$0xff]
        %v154 = vld [vmem:[%s142 + $0x40] sm:$0xff]
        %v155 = vld [vmem:[%s142 + $0x48] sm:$0xff]
        %v156 = vld [vmem:[%s142 + $0x50] sm:$0xff]
        %v157 = vld [vmem:[%s142 + $0x58] sm:$0xff]
        %v158 = vld [vmem:[%s142 + $0x60] sm:$0xff]
        %v159 = vld [vmem:[%s142 + $0x68] sm:$0xff]
        %v160 = vld [vmem:[%s142 + $0x70] sm:$0xff]
        %v161 = vld [vmem:[%s142 + $0x78] sm:$0xff]
        %v162 = vld [vmem:[%s142 + $0x80] sm:$0xff]
        %v163 = vld [vmem:[%s142 + $0x88] sm:$0xff]
        %v164 = vld [vmem:[%s142 + $0x90] sm:$0xff]
        %v165 = vld [vmem:[%s142 + $0x98] sm:$0xff]
        %v166 = vld [vmem:[%s142 + $0xa0] sm:$0xff]
        %v167 = vld [vmem:[%s142 + $0xa8] sm:$0xff]
        %v168 = vld [vmem:[%s142 + $0xb0] sm:$0xff]
        %v169 = vld [vmem:[%s142 + $0xb8] sm:$0xff]
        %v170 = vld [vmem:[%s142 + $0xc0] sm:$0xff]
        %v171 = vld [vmem:[%s142 + $0xc8] sm:$0xff]
        %v172 = vld [vmem:[%s142 + $0xd0] sm:$0xff]
        %v173 = vld [vmem:[%s142 + $0xd8] sm:$0xff]
        %v174 = vld [vmem:[%s142 + $0xe0] sm:$0xff]
        %v175 = vld [vmem:[%s142 + $0xe8] sm:$0xff]
        %v176 = vld [vmem:[%s142 + $0xf0] sm:$0xff]
        %v177 = vld [vmem:[%s142 + $0xf8] sm:$0xff]
        %v178 = vpack.c.bf16 %v147, %v146
        %v179 = vpack.c.bf16 %v149, %v148
        %v180 = vpack.c.bf16 %v151, %v150
        %v181 = vpack.c.bf16 %v153, %v152
        %v182 = vpack.c.bf16 %v155, %v154
        %v183 = vpack.c.bf16 %v157, %v156
        %v184 = vpack.c.bf16 %v159, %v158
        %v185 = vpack.c.bf16 %v161, %v160
        %v186 = vpack.c.bf16 %v163, %v162
        %v187 = vpack.c.bf16 %v165, %v164
        %v188 = vpack.c.bf16 %v167, %v166
        %v189 = vpack.c.bf16 %v169, %v168
        %v190 = vpack.c.bf16 %v171, %v170
        %v191 = vpack.c.bf16 %v173, %v172
        %v192 = vpack.c.bf16 %v175, %v174
        %v193 = vpack.c.bf16 %v177, %v176
        %v194 = vld [vmem:[%s1] sm:$0xf]
        %v195 = vld [vmem:[%s1 + $0x4] sm:$0xf]
        %v196 = vld [vmem:[%s1 + $0x8] sm:$0xf]
        %v197 = vld [vmem:[%s1 + $0xc] sm:$0xf]
        %v202 = vunpack.c.l.b16 %v194
        %v203 = vunpack.c.l.b16 %v195
        %v204 = vunpack.c.l.b16 %v196
        %v205 = vunpack.c.l.b16 %v197
        %v206 = vpack.c.b16 %v203, %v202
        %v207 = vpack.c.b16 %v205, %v204
        %vm210 = vcmask 261120
        %v212 = vsel %vm210, %v178, 0
        %v215 = vsel %vm210, %v179, 0
        %v218 = vsel %vm210, %v180, 0
        %v221 = vsel %vm210, %v181, 0
        %v224 = vsel %vm210, %v182, 0
        %v227 = vsel %vm210, %v183, 0
        %v230 = vsel %vm210, %v184, 0
        %v233 = vsel %vm210, %v185, 0
        %v236 = vsel %vm210, %v186, 0
        %v239 = vsel %vm210, %v187, 0
        %v242 = vsel %vm210, %v188, 0
        %v245 = vsel %vm210, %v189, 0
        %v248 = vsel %vm210, %v190, 0
        %v251 = vsel %vm210, %v191, 0
        %v254 = vsel %vm210, %v192, 0
        %v257 = vsel %vm210, %v193, 0
        %259 = vmatprep.subr.bf16.mxu0 0
        %260 = vmatpush1.bf16.msra.mxu0 %v206
        %261 = vmatprep.subr.bf16.mxu0 0
        %262 = vmatpush1.bf16.msra.mxu0 %v207
        %263 = vmatprep.subr.bf16.mxu0 0
        %264 = vmatpush1.bf16.msra.mxu0 0
        %265 = vmatprep.subr.bf16.mxu0 0
        %266 = vmatpush1.bf16.msra.mxu0 0
        %267 = vmatprep.subr.bf16.mxu0 0
        %268 = vmatpush1.bf16.msra.mxu0 0
        %269 = vmatprep.subr.bf16.mxu0 0
        %270 = vmatpush1.bf16.msra.mxu0 0
        %271 = vmatprep.subr.bf16.mxu0 0
        %272 = vmatpush1.bf16.msra.mxu0 0
        %273 = vmatprep.subr.bf16.mxu0 0
        %274 = vmatpush1.bf16.msra.mxu0 0
        %275 = vmatprep.subr.bf16.mxu0 0
        %276 = vmatpush1.bf16.msra.mxu0 0
        %277 = vmatprep.subr.bf16.mxu0 0
        %278 = vmatpush1.bf16.msra.mxu0 0
        %279 = vmatprep.subr.bf16.mxu0 0
        %280 = vmatpush1.bf16.msra.mxu0 0
        %281 = vmatprep.subr.bf16.mxu0 0
        %282 = vmatpush1.bf16.msra.mxu0 0
        %283 = vmatprep.subr.bf16.mxu0 0
        %284 = vmatpush1.bf16.msra.mxu0 0
        %285 = vmatprep.subr.bf16.mxu0 0
        %286 = vmatpush1.bf16.msra.mxu0 0
        %287 = vmatprep.subr.bf16.mxu0 0
        %288 = vmatpush1.bf16.msra.mxu0 0
        %289 = vmatprep.subr.bf16.mxu0 0
        %290 = vmatpush1.bf16.msra.mxu0 0
        %291 = vmatprep.mubr.bf16.mxu0 0
        %292 = vmatmul.mubr.bf16.gmra.mrb[0].mxu0 %v212
        %v293 = vpop.f32.mrb[0].mxu0
        %v294 = vadd.f32 0.0, %v293
        %v295 = vpop.f32.mrb[0].mxu0
        %v296 = vpop.f32.mrb[0].mxu0
        %v297 = vadd.f32 0.0, %v296
        %v298 = vpop.f32.mrb[0].mxu0
        %299 = vmatprep.mubr.bf16.mxu0 0
        %300 = vmatmul.mubr.bf16.gmra.mrb[0].mxu0 %v215
        %v301 = vpop.f32.mrb[0].mxu0
        %v302 = vadd.f32 0.0, %v301
        %v303 = vpop.f32.mrb[0].mxu0
        %v304 = vpop.f32.mrb[0].mxu0
        %v305 = vadd.f32 0.0, %v304
        %v306 = vpop.f32.mrb[0].mxu0
        %307 = vmatprep.mubr.bf16.mxu0 0
        %308 = vmatmul.mubr.bf16.gmra.mrb[0].mxu0 %v218
        %v309 = vpop.f32.mrb[0].mxu0
        %v310 = vadd.f32 0.0, %v309
        %v311 = vpop.f32.mrb[0].mxu0
        %v312 = vpop.f32.mrb[0].mxu0
        %v313 = vadd.f32 0.0, %v312
        %v314 = vpop.f32.mrb[0].mxu0
        %315 = vmatprep.mubr.bf16.mxu0 0
        %316 = vmatmul.mubr.bf16.gmra.mrb[0].mxu0 %v221
        %v317 = vpop.f32.mrb[0].mxu0
        %v318 = vadd.f32 0.0, %v317
        %v319 = vpop.f32.mrb[0].mxu0
        %v320 = vpop.f32.mrb[0].mxu0
        %v321 = vadd.f32 0.0, %v320
        %v322 = vpop.f32.mrb[0].mxu0
        %323 = vmatprep.mubr.bf16.mxu0 0
        %324 = vmatmul.mubr.bf16.gmra.mrb[0].mxu0 %v224
        %v325 = vpop.f32.mrb[0].mxu0
        %v326 = vadd.f32 0.0, %v325
        %v327 = vpop.f32.mrb[0].mxu0
        %v328 = vpop.f32.mrb[0].mxu0
        %v329 = vadd.f32 0.0, %v328
        %v330 = vpop.f32.mrb[0].mxu0
        %331 = vmatprep.mubr.bf16.mxu0 0
        %332 = vmatmul.mubr.bf16.gmra.mrb[0].mxu0 %v227
        %v333 = vpop.f32.mrb[0].mxu0
        %v334 = vadd.f32 0.0, %v333
        %v335 = vpop.f32.mrb[0].mxu0
        %v336 = vpop.f32.mrb[0].mxu0
        %v337 = vadd.f32 0.0, %v336
        %v338 = vpop.f32.mrb[0].mxu0
        %339 = vmatprep.mubr.bf16.mxu0 0
        %340 = vmatmul.mubr.bf16.gmra.mrb[0].mxu0 %v230
        %v341 = vpop.f32.mrb[0].mxu0
        %v342 = vadd.f32 0.0, %v341
        %v343 = vpop.f32.mrb[0].mxu0
        %v344 = vpop.f32.mrb[0].mxu0
        %v345 = vadd.f32 0.0, %v344
        %v346 = vpop.f32.mrb[0].mxu0
        %347 = vmatprep.mubr.bf16.mxu0 0
        %348 = vmatmul.mubr.bf16.gmra.mrb[0].mxu0 %v233
        %v349 = vpop.f32.mrb[0].mxu0
        %v350 = vadd.f32 0.0, %v349
        %v351 = vpop.f32.mrb[0].mxu0
        %v352 = vpop.f32.mrb[0].mxu0
        %v353 = vadd.f32 0.0, %v352
        %v354 = vpop.f32.mrb[0].mxu0
        %355 = vmatprep.mubr.bf16.mxu0 0
        %356 = vmatmul.mubr.bf16.gmra.mrb[0].mxu0 %v236
        %v357 = vpop.f32.mrb[0].mxu0
        %v358 = vadd.f32 0.0, %v357
        %v359 = vpop.f32.mrb[0].mxu0
        %v360 = vpop.f32.mrb[0].mxu0
        %v361 = vadd.f32 0.0, %v360
        %v362 = vpop.f32.mrb[0].mxu0
        %363 = vmatprep.mubr.bf16.mxu0 0
        %364 = vmatmul.mubr.bf16.gmra.mrb[0].mxu0 %v239
        %v365 = vpop.f32.mrb[0].mxu0
        %v366 = vadd.f32 0.0, %v365
        %v367 = vpop.f32.mrb[0].mxu0
        %v368 = vpop.f32.mrb[0].mxu0
        %v369 = vadd.f32 0.0, %v368
        %v370 = vpop.f32.mrb[0].mxu0
        %371 = vmatprep.mubr.bf16.mxu0 0
        %372 = vmatmul.mubr.bf16.gmra.mrb[0].mxu0 %v242
        %v373 = vpop.f32.mrb[0].mxu0
        %v374 = vadd.f32 0.0, %v373
        %v375 = vpop.f32.mrb[0].mxu0
        %v376 = vpop.f32.mrb[0].mxu0
        %v377 = vadd.f32 0.0, %v376
        %v378 = vpop.f32.mrb[0].mxu0
        %379 = vmatprep.mubr.bf16.mxu0 0
        %380 = vmatmul.mubr.bf16.gmra.mrb[0].mxu0 %v245
        %v381 = vpop.f32.mrb[0].mxu0
        %v382 = vadd.f32 0.0, %v381
        %v383 = vpop.f32.mrb[0].mxu0
        %v384 = vpop.f32.mrb[0].mxu0
        %v385 = vadd.f32 0.0, %v384
        %v386 = vpop.f32.mrb[0].mxu0
        %387 = vmatprep.mubr.bf16.mxu0 0
        %388 = vmatmul.mubr.bf16.gmra.mrb[0].mxu0 %v248
        %v389 = vpop.f32.mrb[0].mxu0
        %v390 = vadd.f32 0.0, %v389
        %v391 = vpop.f32.mrb[0].mxu0
        %v392 = vpop.f32.mrb[0].mxu0
        %v393 = vadd.f32 0.0, %v392
        %v394 = vpop.f32.mrb[0].mxu0
        %395 = vmatprep.mubr.bf16.mxu0 0
        %396 = vmatmul.mubr.bf16.gmra.mrb[0].mxu0 %v251
        %v397 = vpop.f32.mrb[0].mxu0
        %v398 = vadd.f32 0.0, %v397
        %v399 = vpop.f32.mrb[0].mxu0
        %v400 = vpop.f32.mrb[0].mxu0
        %v401 = vadd.f32 0.0, %v400
        %v402 = vpop.f32.mrb[0].mxu0
        %403 = vmatprep.mubr.bf16.mxu0 0
        %404 = vmatmul.mubr.bf16.gmra.mrb[0].mxu0 %v254
        %v405 = vpop.f32.mrb[0].mxu0
        %v406 = vadd.f32 0.0, %v405
        %v407 = vpop.f32.mrb[0].mxu0
        %v408 = vpop.f32.mrb[0].mxu0
        %v409 = vadd.f32 0.0, %v408
        %v410 = vpop.f32.mrb[0].mxu0
        %411 = vmatprep.mubr.bf16.mxu0 0
        %412 = vmatmul.mubr.bf16.gmra.mrb[0].mxu0 %v257
        %v413 = vpop.f32.mrb[0].mxu0
        %v414 = vadd.f32 0.0, %v413
        %v415 = vpop.f32.mrb[0].mxu0
        %v416 = vpop.f32.mrb[0].mxu0
        %v417 = vadd.f32 0.0, %v416
        %v418 = vpop.f32.mrb[0].mxu0
        %419 = vdwg.mxu0
        %v420 = vpack.c.bf16 %v297, %v294
        %v421 = vpack.c.bf16 %v305, %v302
        %v422 = vpack.c.bf16 %v313, %v310
        %v423 = vpack.c.bf16 %v321, %v318
        %v424 = vpack.c.bf16 %v329, %v326
        %v425 = vpack.c.bf16 %v337, %v334
        %v426 = vpack.c.bf16 %v345, %v342
        %v427 = vpack.c.bf16 %v353, %v350
        %v428 = vpack.c.bf16 %v361, %v358
        %v429 = vpack.c.bf16 %v369, %v366
        %v430 = vpack.c.bf16 %v377, %v374
        %v431 = vpack.c.bf16 %v385, %v382
        %v432 = vpack.c.bf16 %v393, %v390
        %v433 = vpack.c.bf16 %v401, %v398
        %v434 = vpack.c.bf16 %v409, %v406
        %v435 = vpack.c.bf16 %v417, %v414
        %v452 = vunpack.c.l.b16 %v420
        %v453 = vunpack.c.h.b16 %v420
        %v454 = vunpack.c.l.b16 %v421
        %v455 = vunpack.c.h.b16 %v421
        %v456 = vunpack.c.l.b16 %v422
        %v457 = vunpack.c.h.b16 %v422
        %v458 = vunpack.c.l.b16 %v423
        %v459 = vunpack.c.h.b16 %v423
        %v460 = vunpack.c.l.b16 %v424
        %v461 = vunpack.c.h.b16 %v424
        %v462 = vunpack.c.l.b16 %v425
        %v463 = vunpack.c.h.b16 %v425
        %v464 = vunpack.c.l.b16 %v426
        %v465 = vunpack.c.h.b16 %v426
        %v466 = vunpack.c.l.b16 %v427
        %v467 = vunpack.c.h.b16 %v427
        %v468 = vunpack.c.l.b16 %v428
        %v469 = vunpack.c.h.b16 %v428
        %v470 = vunpack.c.l.b16 %v429
        %v471 = vunpack.c.h.b16 %v429
        %v472 = vunpack.c.l.b16 %v430
        %v473 = vunpack.c.h.b16 %v430
        %v474 = vunpack.c.l.b16 %v431
        %v475 = vunpack.c.h.b16 %v431
        %v476 = vunpack.c.l.b16 %v432
        %v477 = vunpack.c.h.b16 %v432
        %v478 = vunpack.c.l.b16 %v433
        %v479 = vunpack.c.h.b16 %v433
        %v480 = vunpack.c.l.b16 %v434
        %v481 = vunpack.c.h.b16 %v434
        %v482 = vunpack.c.l.b16 %v435
        %v483 = vunpack.c.h.b16 %v435
        %v484 = vpack.c.b16 %v452, %v452
        %v485 = vpack.c.b16 %v453, %v453
        %v486 = vpack.c.b16 %v454, %v454
        %v487 = vpack.c.b16 %v455, %v455
        %v488 = vpack.c.b16 %v456, %v456
        %v489 = vpack.c.b16 %v457, %v457
        %v490 = vpack.c.b16 %v458, %v458
        %v491 = vpack.c.b16 %v459, %v459
        %v492 = vpack.c.b16 %v460, %v460
        %v493 = vpack.c.b16 %v461, %v461
        %v494 = vpack.c.b16 %v462, %v462
        %v495 = vpack.c.b16 %v463, %v463
        %v496 = vpack.c.b16 %v464, %v464
        %v497 = vpack.c.b16 %v465, %v465
        %v498 = vpack.c.b16 %v466, %v466
        %v499 = vpack.c.b16 %v467, %v467
        %v500 = vpack.c.b16 %v468, %v468
        %v501 = vpack.c.b16 %v469, %v469
        %v502 = vpack.c.b16 %v470, %v470
        %v503 = vpack.c.b16 %v471, %v471
        %v504 = vpack.c.b16 %v472, %v472
        %v505 = vpack.c.b16 %v473, %v473
        %v506 = vpack.c.b16 %v474, %v474
        %v507 = vpack.c.b16 %v475, %v475
        %v508 = vpack.c.b16 %v476, %v476
        %v509 = vpack.c.b16 %v477, %v477
        %v510 = vpack.c.b16 %v478, %v478
        %v511 = vpack.c.b16 %v479, %v479
        %v512 = vpack.c.b16 %v480, %v480
        %v513 = vpack.c.b16 %v481, %v481
        %v514 = vpack.c.b16 %v482, %v482
        %v515 = vpack.c.b16 %v483, %v483
        %548 = vst [vmem:[%s137] sm:$0xf] %v484
        %549 = vst [vmem:[%s137 + $0x4] sm:$0xf] %v485
        %550 = vst [vmem:[%s137 + $0x8] sm:$0xf] %v486
        %551 = vst [vmem:[%s137 + $0xc] sm:$0xf] %v487
        %552 = vst [vmem:[%s137 + $0x10] sm:$0xf] %v488
        %553 = vst [vmem:[%s137 + $0x14] sm:$0xf] %v489
        %554 = vst [vmem:[%s137 + $0x18] sm:$0xf] %v490
        %555 = vst [vmem:[%s137 + $0x1c] sm:$0xf] %v491
        %556 = vst [vmem:[%s137 + $0x20] sm:$0xf] %v492
        %557 = vst [vmem:[%s137 + $0x24] sm:$0xf] %v493
        %558 = vst [vmem:[%s137 + $0x28] sm:$0xf] %v494
        %559 = vst [vmem:[%s137 + $0x2c] sm:$0xf] %v495
        %560 = vst [vmem:[%s137 + $0x30] sm:$0xf] %v496
        %561 = vst [vmem:[%s137 + $0x34] sm:$0xf] %v497
        %562 = vst [vmem:[%s137 + $0x38] sm:$0xf] %v498
        %563 = vst [vmem:[%s137 + $0x3c] sm:$0xf] %v499
        %564 = vst [vmem:[%s137 + $0x40] sm:$0xf] %v500
        %565 = vst [vmem:[%s137 + $0x44] sm:$0xf] %v501
        %566 = vst [vmem:[%s137 + $0x48] sm:$0xf] %v502
        %567 = vst [vmem:[%s137 + $0x4c] sm:$0xf] %v503
        %568 = vst [vmem:[%s137 + $0x50] sm:$0xf] %v504
        %569 = vst [vmem:[%s137 + $0x54] sm:$0xf] %v505
        %570 = vst [vmem:[%s137 + $0x58] sm:$0xf] %v506
        %571 = vst [vmem:[%s137 + $0x5c] sm:$0xf] %v507
        %572 = vst [vmem:[%s137 + $0x60] sm:$0xf] %v508
        %573 = vst [vmem:[%s137 + $0x64] sm:$0xf] %v509
        %574 = vst [vmem:[%s137 + $0x68] sm:$0xf] %v510
        %575 = vst [vmem:[%s137 + $0x6c] sm:$0xf] %v511
        %576 = vst [vmem:[%s137 + $0x70] sm:$0xf] %v512
        %577 = vst [vmem:[%s137 + $0x74] sm:$0xf] %v513
        %578 = vst [vmem:[%s137 + $0x78] sm:$0xf] %v514
        %579 = vst [vmem:[%s137 + $0x7c] sm:$0xf] %v515
        %s580 = sand.u32 %s71, 1
        %s581 = scalar_lea.sflag [#allocation3], %s580
        %s582 = sand.u32 %s71, 1
        %s583 = smul.addr %s582, 128
        %s584 = scalar_lea.vmem [#allocation2], %s583
        // Predicated region
        $region29: #{tpu_custom_call.1} parent=27 // pred_check
          %p585 = pneg %p81
        $region30: #{tpu_custom_call.1} parent=27 // pred_check_branch
          %587 = sbr.rel (%p585) target = $region32
        $region31: #{tpu_custom_call.1} parent=27 // pred_region
          %s588 = smul.u32 32, %s16
          %s590 = ssub.s32 2048, 2048
          %591 = vsyncadd %s581, %s590
          %s592 = smul.addr %s588, 64
          %s593 = scalar_lea.hbm %s2, %s592
          %s594 = sshll.u32 %s584, 4
          %s595 = int_to_ptr.vmem [resolvable:$true] %s594
          %600 = dma.vmem_to_hbm [thread:$0]  %s595, 2048, %s593, %s581, 64, 64, 4
        $region32: #{tpu_custom_call.1} parent=27 // pred_fallthru
          _
      $region28: #{tpu_custom_call.1} parent=5 // pred_fallthru
        _
      %p601 = scmp.le.s32.totalorder 2, %s11
      // Predicated region
      $region33: #{tpu_custom_call.1} parent=5 // pred_check
        %p602 = pneg %p601
      $region34: #{tpu_custom_call.1} parent=5 // pred_check_branch
        %604 = sbr.rel (%p602) target = $region36
      $region35: #{tpu_custom_call.1} parent=5 // pred_region
        %s605 = ssub.s32 %s11, 2
        // Predicated region
        $region37: #{tpu_custom_call.1} parent=35 // pred_check
          %p606 = pneg %p87
        $region38: #{tpu_custom_call.1} parent=35 // pred_check_branch
          %608 = sbr.rel (%p606) target = $region40
        $region39: #{tpu_custom_call.1} parent=35 // pred_region
          %s609 = sand.u32 %s72, 1
          %s610 = scalar_lea.sflag [#allocation3], %s609
          %s611 = sand.u32 %s72, 1
          %s612 = smul.addr %s611, 128
          %s613 = scalar_lea.vmem [#allocation2], %s612
          %614 = dma.done %s610, 2048
        $region40: #{tpu_custom_call.1} parent=35 // pred_fallthru
          _
      $region36: #{tpu_custom_call.1} parent=5 // pred_fallthru
        _
    $region6: #{tpu_custom_call.1} parent=1 // loop_footer
      %s15 = sadd.s32 1, %s11
    $region7: #{tpu_custom_call.1} parent=1 // loop_footer_branch
      %10 = sbr.rel target = $region3
    $region8: #{tpu_custom_call.1} parent=1 // loop_exit
      _
    %615 = vsyncpa [#allocation3], 1
    %s616 = scalar_lea.sflag [#allocation3], 1
    %617 = vsyncpa %s616, 1

</llo_original>
